<compile_context>
chip_gen: v6e
topology: v6e:2x2x1
jax: 0.10.0
libtpu: 0.0.40
codegen_flags: <defaults>
</compile_context>

<pallas_src>
import jax
import jax.numpy as jnp
from jax.experimental import pallas as pl
from jax.experimental.pallas import tpu as pltpu


def _round_up(x, m):
    return ((x + m - 1) // m) * m


def _choose_tile(n, target=256):
    """Sequence tile: multiple of 8, bounded VMEM, modest padding."""
    if n <= target:
        return _round_up(n, 8)
    for t in range(target, 127, -128):
        if _round_up(n, t) - n <= n // 8:
            return t
    return 128


def _vmem_limit_bytes():
    """Generation-aware scoped-VMEM budget (v7x has only 64 MiB physical VMEM)."""
    try:
        cap = int(pltpu.get_tpu_info().vmem_capacity_bytes)
    except Exception:
        cap = 64 * 1024 * 1024
    return max(32 * 1024 * 1024, min(cap * 5 // 8, 80 * 1024 * 1024))


# --------------------------------------------------------------------------- #
# Kernel 1: QKV projection (wide lane-dense matmuls, head-split on writeback). #
# --------------------------------------------------------------------------- #
def make_qkv_kernel(heads, dim_head):
    def kernel(x_ref, wq_ref, wk_ref, wv_ref, q_ref, k_ref, v_ref):
        x = x_ref[...]  # (tile, D) bf16

        def project_and_split(w_ref, o_ref):
            # One wide matmul: (tile, D) @ (D, inner) with f32 accumulation.
            y = jnp.dot(x, w_ref[...],
                        preferred_element_type=jnp.float32).astype(jnp.bfloat16)
            # Split heads with static lane slices; runs once per token tile
            # (amortized over every q-tile that reuses K/V later).
            for h in range(heads):
                o_ref[h, :, :] = y[:, h * dim_head:(h + 1) * dim_head]

        project_and_split(wq_ref, q_ref)
        project_and_split(wk_ref, k_ref)
        project_and_split(wv_ref, v_ref)

    return kernel


# --------------------------------------------------------------------------- #
# Kernel 2: flash attention (online softmax) + fused output projection.        #
# --------------------------------------------------------------------------- #
def make_flash_kernel(heads, dim_head, tq, tk, n_valid, n_padded):
    inner = heads * dim_head

    def kernel(q_ref, k_ref, v_ref, wo_ref, b_ref, o_ref,
               m_sc, l_sc, acc_sc, o2d_sc):
        ki = pl.program_id(2)

        @pl.when(ki == 0)
        def _init():
            m_sc[...] = jnp.full((heads, tq, 1), -jnp.inf, jnp.float32)
            l_sc[...] = jnp.zeros((heads, tq, 1), jnp.float32)
            acc_sc[...] = jnp.zeros((heads, tq, dim_head), jnp.float32)

        # Scores: batched over heads, contraction on the last dims (MXU consumes
        # the transposed operand directly), f32 result.
        s = jnp.einsum('hqd,hkd->hqk', q_ref[...], k_ref[...],
                       preferred_element_type=jnp.float32)       # (h, tq, tk)

        if n_valid != n_padded:                                   # static Python
            col = jax.lax.broadcasted_iota(jnp.int32, (1, 1, tk), 2) + ki * tk
            s = jnp.where(col < n_valid, s, -jnp.inf)

        # Online softmax (all f32).
        m_prev = m_sc[...]
        m_new = jnp.maximum(m_prev, jnp.max(s, axis=-1, keepdims=True))
        alpha = jnp.exp(m_prev - m_new)
        p = jnp.exp(s - m_new)
        l_sc[...] = alpha * l_sc[...] + jnp.sum(p, axis=-1, keepdims=True)
        acc_sc[...] = alpha * acc_sc[...] + jnp.einsum(
            'hqk,hkd->hqd', p.astype(jnp.bfloat16), v_ref[...],
            preferred_element_type=jnp.float32)
        m_sc[...] = m_new

        @pl.when(ki == pl.num_programs(2) - 1)
        def _finalize():
            out = acc_sc[...] * pl.reciprocal(l_sc[...], approx=True)  # (h,tq,dh)
            outb = out.astype(jnp.bfloat16)
            # Assemble a lane-dense (tq, inner) slab (static per-head stores), then
            # ONE wide output-projection matmul with full-depth contraction.
            for h in range(heads):
                o2d_sc[:, h * dim_head:(h + 1) * dim_head] = outb[h]
            proj = jnp.dot(o2d_sc[...], wo_ref[...],
                           preferred_element_type=jnp.float32)    # (tq, D_pad)
            o_ref[...] = (proj + b_ref[...]).astype(o_ref.dtype)

    return kernel


def attention_pallas(x, w_qkv, w_out, b_out, *, heads, dim_head):
    """x: (B, N, D) f32.  w_qkv: (3*inner, D), w_out: (D_out, inner), b_out: (D_out,)."""
    B, N, D = x.shape
    inner = heads * dim_head
    scale = dim_head ** (-0.5)
    out_dtype = x.dtype

    D_out = w_out.shape[0]
    D_pad = _round_up(D_out, 128)          # lane-dense output writeback

    tile = _choose_tile(N)
    N_pad = _round_up(N, tile)
    tq = tk = tile
    nq = N_pad // tq
    nk = N_pad // tk
    vmem_limit = _vmem_limit_bytes()

    # ---- host-side prep: lane-dense weight slabs, scale folded into Q, bf16.
    slab = jnp.transpose(w_qkv)                                  # (D, 3*inner)
    wq = (slab[:, 0 * inner:1 * inner] * scale).astype(jnp.bfloat16)
    wk = slab[:, 1 * inner:2 * inner].astype(jnp.bfloat16)
    wv = slab[:, 2 * inner:3 * inner].astype(jnp.bfloat16)

    wo = jnp.transpose(w_out)                                    # (inner, D_out)
    bo = b_out
    if D_pad != D_out:
        wo = jnp.pad(wo, ((0, 0), (0, D_pad - D_out)))
        bo = jnp.pad(b_out, (0, D_pad - D_out))
    wo = wo.astype(jnp.bfloat16)
    bo = bo.reshape(1, D_pad).astype(jnp.float32)

    xp = x.astype(jnp.bfloat16)                                  # halve HBM reads
    if N_pad != N:
        xp = jnp.pad(xp, ((0, 0), (0, N_pad - N), (0, 0)))

    # ------------------------------------------------------------------ #
    # Call 1: QKV projection -> (B, heads, N_pad, dim_head) bf16, computed once.
    # ------------------------------------------------------------------ #
    qkv_shape = jax.ShapeDtypeStruct((B, heads, N_pad, dim_head), jnp.bfloat16)
    proj_cost = pl.CostEstimate(
        flops=int(2 * B * N_pad * D * 3 * inner),
        transcendentals=0,
        bytes_accessed=int(B * N_pad * D * 2 + 3 * D * inner * 2
                           + 3 * B * heads * N_pad * dim_head * 2),
    )
    q_all, k_all, v_all = pl.pallas_call(
        make_qkv_kernel(heads, dim_head),
        out_shape=(qkv_shape, qkv_shape, qkv_shape),
        grid_spec=pltpu.PrefetchScalarGridSpec(
            num_scalar_prefetch=0,
            grid=(B, N_pad // tile),
            in_specs=[
                pl.BlockSpec((None, tile, D), lambda b, i: (b, i, 0)),   # x tile
                pl.BlockSpec((D, inner), lambda b, i: (0, 0)),           # wq (scaled)
                pl.BlockSpec((D, inner), lambda b, i: (0, 0)),           # wk
                pl.BlockSpec((D, inner), lambda b, i: (0, 0)),           # wv
            ],
            out_specs=[
                pl.BlockSpec((None, heads, tile, dim_head), lambda b, i: (b, 0, i, 0)),
                pl.BlockSpec((None, heads, tile, dim_head), lambda b, i: (b, 0, i, 0)),
                pl.BlockSpec((None, heads, tile, dim_head), lambda b, i: (b, 0, i, 0)),
            ],
        ),
        compiler_params=pltpu.CompilerParams(
            dimension_semantics=("parallel", "parallel"),
            vmem_limit_bytes=vmem_limit,
        ),
        cost_estimate=proj_cost,
    )(xp, wq, wk, wv)

    # ------------------------------------------------------------------ #
    # Call 2: flash attention + fused (tq, inner) @ (inner, D_pad) projection.
    # ------------------------------------------------------------------ #
    attn_cost = pl.CostEstimate(
        flops=int(4 * B * heads * N_pad * N_pad * dim_head
                  + 2 * B * N_pad * inner * D_pad),
        transcendentals=int(B * heads * N_pad * N_pad),
        bytes_accessed=int(B * heads * N_pad * dim_head * 2            # q
                           + 2 * nq * B * heads * N_pad * dim_head * 2  # k, v per q-tile
                           + inner * D_pad * 2 + D_pad * 4
                           + B * N_pad * D_pad * 4),
    )
    out = pl.pallas_call(
        make_flash_kernel(heads, dim_head, tq, tk, N, N_pad),
        out_shape=jax.ShapeDtypeStruct((B, N_pad, D_pad), out_dtype),
        grid_spec=pltpu.PrefetchScalarGridSpec(
            num_scalar_prefetch=0,
            grid=(B, nq, nk),
            in_specs=[
                pl.BlockSpec((None, heads, tq, dim_head), lambda b, qi, ki: (b, 0, qi, 0)),
                pl.BlockSpec((None, heads, tk, dim_head), lambda b, qi, ki: (b, 0, ki, 0)),
                pl.BlockSpec((None, heads, tk, dim_head), lambda b, qi, ki: (b, 0, ki, 0)),
                pl.BlockSpec((inner, D_pad), lambda b, qi, ki: (0, 0)),   # wo
                pl.BlockSpec((1, D_pad), lambda b, qi, ki: (0, 0)),       # bias
            ],
            out_specs=pl.BlockSpec((None, tq, D_pad), lambda b, qi, ki: (b, qi, 0)),
            scratch_shapes=[
                pltpu.VMEM((heads, tq, 1), jnp.float32),         # running max
                pltpu.VMEM((heads, tq, 1), jnp.float32),         # running sum
                pltpu.VMEM((heads, tq, dim_head), jnp.float32),  # output accumulator
                pltpu.VMEM((tq, inner), jnp.bfloat16),           # lane-dense head concat
            ],
        ),
        compiler_params=pltpu.CompilerParams(
            dimension_semantics=("parallel", "parallel", "arbitrary"),
            vmem_limit_bytes=vmem_limit,
        ),
        cost_estimate=attn_cost,
    )(q_all, k_all, v_all, wo, bo)

    if N_pad != N or D_pad != D_out:
        out = out[:, :N, :D_out]
    return out


def attention_ref(x, w_qkv, w_out, b_out, *, heads, dim_head):
    """Plain-JAX f32 reference matching the PyTorch forward (dropout=0)."""
    B, N, D = x.shape
    inner = heads * dim_head
    scale = dim_head ** (-0.5)
    qkv = x @ w_qkv.T                                   # (B, N, 3*inner)
    q, k, v = jnp.split(qkv, 3, axis=-1)

    def to_heads(t):
        return jnp.transpose(t.reshape(B, N, heads, dim_head), (0, 2, 1, 3))

    q, k, v = map(to_heads, (q, k, v))                  # (B, h, N, d)
    dots = jnp.einsum('bhnd,bhmd->bhnm', q, k) * scale
    attn = jax.nn.softmax(dots, axis=-1)
    out = jnp.einsum('bhnm,bhmd->bhnd', attn, v)
    out = jnp.transpose(out, (0, 2, 1, 3)).reshape(B, N, inner)
    return out @ w_out.T + b_out


if __name__ == "__main__":
    # Small shapes consistent with the module's forward: (B, N, dim) tokens.
    B, N, DIM = 2, 8, 32
    HEADS, DIM_HEAD = 4, 16
    INNER = HEADS * DIM_HEAD

    key = jax.random.PRNGKey(0)
    kx, kq, kw, kb = jax.random.split(key, 4)

    x = jax.random.normal(kx, (B, N, DIM), dtype=jnp.float32)
    # nn.Linear(dim, inner*3, bias=False): weight shape (inner*3, dim)
    w_qkv = jax.random.normal(kq, (3 * INNER, DIM), dtype=jnp.float32) * 0.05
    # nn.Linear(inner, dim): weight (dim, inner), bias (dim,)
    w_out = jax.random.normal(kw, (DIM, INNER), dtype=jnp.float32) * 0.05
    b_out = jax.random.normal(kb, (DIM,), dtype=jnp.float32) * 0.05

    y = attention_pallas(x, w_qkv, w_out, b_out, heads=HEADS, dim_head=DIM_HEAD)
    y = jax.block_until_ready(y)

    y_ref = attention_ref(x, w_qkv, w_out, b_out, heads=HEADS, dim_head=DIM_HEAD)
    assert y.shape == (B, N, DIM)
    # bf16 MXU operands (f32 accumulation) -> slightly looser tolerance than pure f32.
    assert jnp.allclose(y, y_ref, atol=2e-2, rtol=2e-2), "mismatch vs reference"

    print("KERNEL_OK")
</pallas_src>

<mosaic_0001>
module attributes {stable_mosaic.version = 11 : i64} {
  func.func @kernel(%arg0: i32, %arg1: i32, %arg2: memref<1x8x32xbf16, #tpu.memory_space<vmem>>, %arg3: memref<32x64xbf16, #tpu.memory_space<vmem>>, %arg4: memref<32x64xbf16, #tpu.memory_space<vmem>>, %arg5: memref<32x64xbf16, #tpu.memory_space<vmem>>, %arg6: memref<1x4x8x16xbf16, #tpu.memory_space<vmem>>, %arg7: memref<1x4x8x16xbf16, #tpu.memory_space<vmem>>, %arg8: memref<1x4x8x16xbf16, #tpu.memory_space<vmem>>) attributes {dimension_semantics = [#tpu.dimension_semantics<parallel>, #tpu.dimension_semantics<parallel>], iteration_bounds = array<i64: 2, 1>, scalar_prefetch = 0 : i64, scratch_operands = 0 : i64, tpu.core_type = #tpu.core_type<tc>, window_params = [{transform_indices = @transform_0, window_bounds = array<i64: 1, 8, 32>}, {pipeline_mode = #tpu.pipeline_mode<synchronous>, transform_indices = @transform_1, window_bounds = array<i64: 32, 64>}, {pipeline_mode = #tpu.pipeline_mode<synchronous>, transform_indices = @transform_2, window_bounds = array<i64: 32, 64>}, {pipeline_mode = #tpu.pipeline_mode<synchronous>, transform_indices = @transform_3, window_bounds = array<i64: 32, 64>}, {transform_indices = @transform_4, window_bounds = array<i64: 1, 4, 8, 16>}, {transform_indices = @transform_5, window_bounds = array<i64: 1, 4, 8, 16>}, {transform_indices = @transform_6, window_bounds = array<i64: 1, 4, 8, 16>}]} {
    %c0 = arith.constant 0 : index
    %c0_0 = arith.constant 0 : index
    %c0_1 = arith.constant 0 : index
    %0 = vector.load %arg2[%c0, %c0_0, %c0_1] : memref<1x8x32xbf16, #tpu.memory_space<vmem>>, vector<1x8x32xbf16>
    %1 = vector.shape_cast %0 : vector<1x8x32xbf16> to vector<8x32xbf16>
    %c0_2 = arith.constant 0 : index
    %c0_3 = arith.constant 0 : index
    %2 = vector.load %arg3[%c0_2, %c0_3] : memref<32x64xbf16, #tpu.memory_space<vmem>>, vector<32x64xbf16>
    %cst = arith.constant dense<0.000000e+00> : vector<8x64xf32>
    %3 = tpu.matmul %1, %2, %cst {dimension_numbers = #tpu.dot_dimension_numbers<[1], [0], [0], [1], [0, 0, 1, 1], [], []>} : vector<8x32xbf16>, vector<32x64xbf16>, vector<8x64xf32> -> vector<8x64xf32>
    %4 = arith.truncf %3 : vector<8x64xf32> to vector<8x64xbf16>
    %5 = vector.extract_strided_slice %4 {offsets = [0, 0], sizes = [8, 16], strides = [1, 1]} : vector<8x64xbf16> to vector<8x16xbf16>
    %c0_4 = arith.constant 0 : index
    %c0_5 = arith.constant 0 : index
    %c0_6 = arith.constant 0 : index
    %c0_7 = arith.constant 0 : index
    %6 = vector.load %arg6[%c0_4, %c0_5, %c0_6, %c0_7] : memref<1x4x8x16xbf16, #tpu.memory_space<vmem>>, vector<1x1x8x16xbf16>
    %7 = vector.shape_cast %6 : vector<1x1x8x16xbf16> to vector<8x16xbf16>
    %8 = vector.shape_cast %5 : vector<8x16xbf16> to vector<1x1x8x16xbf16>
    tpu.vector_store %arg6[%c0_4, %c0_5, %c0_6, %c0_7], %8 {strides = array<i32>} : memref<1x4x8x16xbf16, #tpu.memory_space<vmem>>, vector<1x1x8x16xbf16>,
    %9 = vector.extract_strided_slice %4 {offsets = [0, 16], sizes = [8, 16], strides = [1, 1]} : vector<8x64xbf16> to vector<8x16xbf16>
    %c0_8 = arith.constant 0 : index
    %c1 = arith.constant 1 : index
    %c0_9 = arith.constant 0 : index
    %c0_10 = arith.constant 0 : index
    %10 = vector.load %arg6[%c0_8, %c1, %c0_9, %c0_10] : memref<1x4x8x16xbf16, #tpu.memory_space<vmem>>, vector<1x1x8x16xbf16>
    %11 = vector.shape_cast %10 : vector<1x1x8x16xbf16> to vector<8x16xbf16>
    %12 = vector.shape_cast %9 : vector<8x16xbf16> to vector<1x1x8x16xbf16>
    tpu.vector_store %arg6[%c0_8, %c1, %c0_9, %c0_10], %12 {strides = array<i32>} : memref<1x4x8x16xbf16, #tpu.memory_space<vmem>>, vector<1x1x8x16xbf16>,
    %13 = vector.extract_strided_slice %4 {offsets = [0, 32], sizes = [8, 16], strides = [1, 1]} : vector<8x64xbf16> to vector<8x16xbf16>
    %c0_11 = arith.constant 0 : index
    %c2 = arith.constant 2 : index
    %c0_12 = arith.constant 0 : index
    %c0_13 = arith.constant 0 : index
    %14 = vector.load %arg6[%c0_11, %c2, %c0_12, %c0_13] : memref<1x4x8x16xbf16, #tpu.memory_space<vmem>>, vector<1x1x8x16xbf16>
    %15 = vector.shape_cast %14 : vector<1x1x8x16xbf16> to vector<8x16xbf16>
    %16 = vector.shape_cast %13 : vector<8x16xbf16> to vector<1x1x8x16xbf16>
    tpu.vector_store %arg6[%c0_11, %c2, %c0_12, %c0_13], %16 {strides = array<i32>} : memref<1x4x8x16xbf16, #tpu.memory_space<vmem>>, vector<1x1x8x16xbf16>,
    %17 = vector.extract_strided_slice %4 {offsets = [0, 48], sizes = [8, 16], strides = [1, 1]} : vector<8x64xbf16> to vector<8x16xbf16>
    %c0_14 = arith.constant 0 : index
    %c3 = arith.constant 3 : index
    %c0_15 = arith.constant 0 : index
    %c0_16 = arith.constant 0 : index
    %18 = vector.load %arg6[%c0_14, %c3, %c0_15, %c0_16] : memref<1x4x8x16xbf16, #tpu.memory_space<vmem>>, vector<1x1x8x16xbf16>
    %19 = vector.shape_cast %18 : vector<1x1x8x16xbf16> to vector<8x16xbf16>
    %20 = vector.shape_cast %17 : vector<8x16xbf16> to vector<1x1x8x16xbf16>
    tpu.vector_store %arg6[%c0_14, %c3, %c0_15, %c0_16], %20 {strides = array<i32>} : memref<1x4x8x16xbf16, #tpu.memory_space<vmem>>, vector<1x1x8x16xbf16>,
    %c0_17 = arith.constant 0 : index
    %c0_18 = arith.constant 0 : index
    %21 = vector.load %arg4[%c0_17, %c0_18] : memref<32x64xbf16, #tpu.memory_space<vmem>>, vector<32x64xbf16>
    %cst_19 = arith.constant dense<0.000000e+00> : vector<8x64xf32>
    %22 = tpu.matmul %1, %21, %cst_19 {dimension_numbers = #tpu.dot_dimension_numbers<[1], [0], [0], [1], [0, 0, 1, 1], [], []>} : vector<8x32xbf16>, vector<32x64xbf16>, vector<8x64xf32> -> vector<8x64xf32>
    %23 = arith.truncf %22 : vector<8x64xf32> to vector<8x64xbf16>
    %24 = vector.extract_strided_slice %23 {offsets = [0, 0], sizes = [8, 16], strides = [1, 1]} : vector<8x64xbf16> to vector<8x16xbf16>
    %c0_20 = arith.constant 0 : index
    %c0_21 = arith.constant 0 : index
    %c0_22 = arith.constant 0 : index
    %c0_23 = arith.constant 0 : index
    %25 = vector.load %arg7[%c0_20, %c0_21, %c0_22, %c0_23] : memref<1x4x8x16xbf16, #tpu.memory_space<vmem>>, vector<1x1x8x16xbf16>
    %26 = vector.shape_cast %25 : vector<1x1x8x16xbf16> to vector<8x16xbf16>
    %27 = vector.shape_cast %24 : vector<8x16xbf16> to vector<1x1x8x16xbf16>
    tpu.vector_store %arg7[%c0_20, %c0_21, %c0_22, %c0_23], %27 {strides = array<i32>} : memref<1x4x8x16xbf16, #tpu.memory_space<vmem>>, vector<1x1x8x16xbf16>,
    %28 = vector.extract_strided_slice %23 {offsets = [0, 16], sizes = [8, 16], strides = [1, 1]} : vector<8x64xbf16> to vector<8x16xbf16>
    %c0_24 = arith.constant 0 : index
    %c1_25 = arith.constant 1 : index
    %c0_26 = arith.constant 0 : index
    %c0_27 = arith.constant 0 : index
    %29 = vector.load %arg7[%c0_24, %c1_25, %c0_26, %c0_27] : memref<1x4x8x16xbf16, #tpu.memory_space<vmem>>, vector<1x1x8x16xbf16>
    %30 = vector.shape_cast %29 : vector<1x1x8x16xbf16> to vector<8x16xbf16>
    %31 = vector.shape_cast %28 : vector<8x16xbf16> to vector<1x1x8x16xbf16>
    tpu.vector_store %arg7[%c0_24, %c1_25, %c0_26, %c0_27], %31 {strides = array<i32>} : memref<1x4x8x16xbf16, #tpu.memory_space<vmem>>, vector<1x1x8x16xbf16>,
    %32 = vector.extract_strided_slice %23 {offsets = [0, 32], sizes = [8, 16], strides = [1, 1]} : vector<8x64xbf16> to vector<8x16xbf16>
    %c0_28 = arith.constant 0 : index
    %c2_29 = arith.constant 2 : index
    %c0_30 = arith.constant 0 : index
    %c0_31 = arith.constant 0 : index
    %33 = vector.load %arg7[%c0_28, %c2_29, %c0_30, %c0_31] : memref<1x4x8x16xbf16, #tpu.memory_space<vmem>>, vector<1x1x8x16xbf16>
    %34 = vector.shape_cast %33 : vector<1x1x8x16xbf16> to vector<8x16xbf16>
    %35 = vector.shape_cast %32 : vector<8x16xbf16> to vector<1x1x8x16xbf16>
    tpu.vector_store %arg7[%c0_28, %c2_29, %c0_30, %c0_31], %35 {strides = array<i32>} : memref<1x4x8x16xbf16, #tpu.memory_space<vmem>>, vector<1x1x8x16xbf16>,
    %36 = vector.extract_strided_slice %23 {offsets = [0, 48], sizes = [8, 16], strides = [1, 1]} : vector<8x64xbf16> to vector<8x16xbf16>
    %c0_32 = arith.constant 0 : index
    %c3_33 = arith.constant 3 : index
    %c0_34 = arith.constant 0 : index
    %c0_35 = arith.constant 0 : index
    %37 = vector.load %arg7[%c0_32, %c3_33, %c0_34, %c0_35] : memref<1x4x8x16xbf16, #tpu.memory_space<vmem>>, vector<1x1x8x16xbf16>
    %38 = vector.shape_cast %37 : vector<1x1x8x16xbf16> to vector<8x16xbf16>
    %39 = vector.shape_cast %36 : vector<8x16xbf16> to vector<1x1x8x16xbf16>
    tpu.vector_store %arg7[%c0_32, %c3_33, %c0_34, %c0_35], %39 {strides = array<i32>} : memref<1x4x8x16xbf16, #tpu.memory_space<vmem>>, vector<1x1x8x16xbf16>,
    %c0_36 = arith.constant 0 : index
    %c0_37 = arith.constant 0 : index
    %40 = vector.load %arg5[%c0_36, %c0_37] : memref<32x64xbf16, #tpu.memory_space<vmem>>, vector<32x64xbf16>
    %cst_38 = arith.constant dense<0.000000e+00> : vector<8x64xf32>
    %41 = tpu.matmul %1, %40, %cst_38 {dimension_numbers = #tpu.dot_dimension_numbers<[1], [0], [0], [1], [0, 0, 1, 1], [], []>} : vector<8x32xbf16>, vector<32x64xbf16>, vector<8x64xf32> -> vector<8x64xf32>
    %42 = arith.truncf %41 : vector<8x64xf32> to vector<8x64xbf16>
    %43 = vector.extract_strided_slice %42 {offsets = [0, 0], sizes = [8, 16], strides = [1, 1]} : vector<8x64xbf16> to vector<8x16xbf16>
    %c0_39 = arith.constant 0 : index
    %c0_40 = arith.constant 0 : index
    %c0_41 = arith.constant 0 : index
    %c0_42 = arith.constant 0 : index
    %44 = vector.load %arg8[%c0_39, %c0_40, %c0_41, %c0_42] : memref<1x4x8x16xbf16, #tpu.memory_space<vmem>>, vector<1x1x8x16xbf16>
    %45 = vector.shape_cast %44 : vector<1x1x8x16xbf16> to vector<8x16xbf16>
    %46 = vector.shape_cast %43 : vector<8x16xbf16> to vector<1x1x8x16xbf16>
    tpu.vector_store %arg8[%c0_39, %c0_40, %c0_41, %c0_42], %46 {strides = array<i32>} : memref<1x4x8x16xbf16, #tpu.memory_space<vmem>>, vector<1x1x8x16xbf16>,
    %47 = vector.extract_strided_slice %42 {offsets = [0, 16], sizes = [8, 16], strides = [1, 1]} : vector<8x64xbf16> to vector<8x16xbf16>
    %c0_43 = arith.constant 0 : index
    %c1_44 = arith.constant 1 : index
    %c0_45 = arith.constant 0 : index
    %c0_46 = arith.constant 0 : index
    %48 = vector.load %arg8[%c0_43, %c1_44, %c0_45, %c0_46] : memref<1x4x8x16xbf16, #tpu.memory_space<vmem>>, vector<1x1x8x16xbf16>
    %49 = vector.shape_cast %48 : vector<1x1x8x16xbf16> to vector<8x16xbf16>
    %50 = vector.shape_cast %47 : vector<8x16xbf16> to vector<1x1x8x16xbf16>
    tpu.vector_store %arg8[%c0_43, %c1_44, %c0_45, %c0_46], %50 {strides = array<i32>} : memref<1x4x8x16xbf16, #tpu.memory_space<vmem>>, vector<1x1x8x16xbf16>,
    %51 = vector.extract_strided_slice %42 {offsets = [0, 32], sizes = [8, 16], strides = [1, 1]} : vector<8x64xbf16> to vector<8x16xbf16>
    %c0_47 = arith.constant 0 : index
    %c2_48 = arith.constant 2 : index
    %c0_49 = arith.constant 0 : index
    %c0_50 = arith.constant 0 : index
    %52 = vector.load %arg8[%c0_47, %c2_48, %c0_49, %c0_50] : memref<1x4x8x16xbf16, #tpu.memory_space<vmem>>, vector<1x1x8x16xbf16>
    %53 = vector.shape_cast %52 : vector<1x1x8x16xbf16> to vector<8x16xbf16>
    %54 = vector.shape_cast %51 : vector<8x16xbf16> to vector<1x1x8x16xbf16>
    tpu.vector_store %arg8[%c0_47, %c2_48, %c0_49, %c0_50], %54 {strides = array<i32>} : memref<1x4x8x16xbf16, #tpu.memory_space<vmem>>, vector<1x1x8x16xbf16>,
    %55 = vector.extract_strided_slice %42 {offsets = [0, 48], sizes = [8, 16], strides = [1, 1]} : vector<8x64xbf16> to vector<8x16xbf16>
    %c0_51 = arith.constant 0 : index
    %c3_52 = arith.constant 3 : index
    %c0_53 = arith.constant 0 : index
    %c0_54 = arith.constant 0 : index
    %56 = vector.load %arg8[%c0_51, %c3_52, %c0_53, %c0_54] : memref<1x4x8x16xbf16, #tpu.memory_space<vmem>>, vector<1x1x8x16xbf16>
    %57 = vector.shape_cast %56 : vector<1x1x8x16xbf16> to vector<8x16xbf16>
    %58 = vector.shape_cast %55 : vector<8x16xbf16> to vector<1x1x8x16xbf16>
    tpu.vector_store %arg8[%c0_51, %c3_52, %c0_53, %c0_54], %58 {strides = array<i32>} : memref<1x4x8x16xbf16, #tpu.memory_space<vmem>>, vector<1x1x8x16xbf16>,
    return
  }
  func.func @transform_0(%arg0: i32, %arg1: i32) -> (i32, i32, i32) {
    %c0_i32 = arith.constant 0 : i32
    %c0_i32_0 = arith.constant 0 : i32
    return %arg0, %arg1, %c0_i32 : i32, i32, i32
  }
  func.func @transform_1(%arg0: i32, %arg1: i32) -> (i32, i32) {
    %c0_i32 = arith.constant 0 : i32
    %c0_i32_0 = arith.constant 0 : i32
    %c0_i32_1 = arith.constant 0 : i32
    return %c0_i32, %c0_i32_0 : i32, i32
  }
  func.func @transform_2(%arg0: i32, %arg1: i32) -> (i32, i32) {
    %c0_i32 = arith.constant 0 : i32
    %c0_i32_0 = arith.constant 0 : i32
    %c0_i32_1 = arith.constant 0 : i32
    return %c0_i32, %c0_i32_0 : i32, i32
  }
  func.func @transform_3(%arg0: i32, %arg1: i32) -> (i32, i32) {
    %c0_i32 = arith.constant 0 : i32
    %c0_i32_0 = arith.constant 0 : i32
    %c0_i32_1 = arith.constant 0 : i32
    return %c0_i32, %c0_i32_0 : i32, i32
  }
  func.func @transform_4(%arg0: i32, %arg1: i32) -> (i32, i32, i32, i32) {
    %c0_i32 = arith.constant 0 : i32
    %c0_i32_0 = arith.constant 0 : i32
    %c0_i32_1 = arith.constant 0 : i32
    return %arg0, %c0_i32, %arg1, %c0_i32_0 : i32, i32, i32, i32
  }
  func.func @transform_5(%arg0: i32, %arg1: i32) -> (i32, i32, i32, i32) {
    %c0_i32 = arith.constant 0 : i32
    %c0_i32_0 = arith.constant 0 : i32
    %c0_i32_1 = arith.constant 0 : i32
    return %arg0, %c0_i32, %arg1, %c0_i32_0 : i32, i32, i32, i32
  }
  func.func @transform_6(%arg0: i32, %arg1: i32) -> (i32, i32, i32, i32) {
    %c0_i32 = arith.constant 0 : i32
    %c0_i32_0 = arith.constant 0 : i32
    %c0_i32_1 = arith.constant 0 : i32
    return %arg0, %c0_i32, %arg1, %c0_i32_0 : i32, i32, i32, i32
  }
}

</mosaic_0001>

<llo_original>
// kernel: tpu_custom_call.1
$region0: #{tpu_custom_call.1}
  #allocation0 [shape = 'u32[]', space=smem, size = 0x4, offset = 0x4, fixed_abs, tag = 'smem constant byte address 0x4 - core index']
  #allocation1 [shape = 'u32[144,128]{1,0:T(1,128)}', space=vmem, size = 0x12000, scoped, tag = 'internal scratch']
  %s0 = inlined_call_operand.hbm [shape: bf16[2,8,32], index: 0, kind: input, shape index: {}]
  %s1 = inlined_call_operand.hbm [shape: bf16[32,64], index: 1, kind: input, shape index: {}]
  %s2 = inlined_call_operand.hbm [shape: bf16[32,64], index: 2, kind: input, shape index: {}]
  %s3 = inlined_call_operand.hbm [shape: bf16[32,64], index: 3, kind: input, shape index: {}]
  %s4 = inlined_call_operand.hbm [shape: bf16[2,4,8,16], index: 4, kind: output, shape index: {0}]
  %s5 = inlined_call_operand.hbm [shape: bf16[2,4,8,16], index: 5, kind: output, shape index: {1}]
  %s6 = inlined_call_operand.hbm [shape: bf16[2,4,8,16], index: 6, kind: output, shape index: {2}]
  %7 = xla_tuple %s4, %s5, %s6
  %s8 = sld [smem:[#allocation0]]
  $region81: #{tpu_custom_call.1} parent=0
    _
  %s10 = ssub.s32 1, %s8
  %s11 = scalar_select 0, %s10, %s8
  $region1: #{tpu_custom_call.1} parent=0
    #allocation2 [shape = 'u8[4096]{0}', space=vmem, size = 0x1000, scoped, tag = 'input window, operand 0']
    #allocation3 [shape = 's32[2]{0}', space=sflag, size = 0x8, scoped, tag = 'scoped memory for tpu_custom_call.1']
    #allocation4 [shape = 's32[2]{0}', space=sflag, size = 0x8, scoped, tag = 'scoped memory for tpu_custom_call.1']
    #allocation5 [shape = 'u8[8192]{0}', space=vmem, size = 0x2000, scoped, tag = 'input window, operand 1, single buffered']
    #allocation6 [shape = 's32[1]{0}', space=sflag, size = 0x4, scoped, tag = 'scoped memory for tpu_custom_call.1']
    #allocation7 [shape = 'u8[8192]{0}', space=vmem, size = 0x2000, scoped, tag = 'input window, operand 2, single buffered']
    #allocation8 [shape = 'u8[8192]{0}', space=vmem, size = 0x2000, scoped, tag = 'input window, operand 3, single buffered']
    #allocation9 [shape = 's32[1]{0}', space=sflag, size = 0x4, scoped, tag = 'scoped memory for tpu_custom_call.1']
    #allocation10 [shape = 'u8[16384]{0}', space=vmem, size = 0x4000, scoped, tag = 'output window, operand 0']
    #allocation11 [shape = 'u8[16384]{0}', space=vmem, size = 0x4000, scoped, tag = 'output window, operand 1']
    #allocation12 [shape = 's32[2]{0}', space=sflag, size = 0x8, scoped, tag = 'scoped memory for tpu_custom_call.1']
    #allocation13 [shape = 'u8[16384]{0}', space=vmem, size = 0x4000, scoped, tag = 'output window, operand 2']
    %12 = vsyncpa [#allocation3], 0
    %s13 = scalar_lea.sflag [#allocation3], 1
    %14 = vsyncpa %s13, 0
    %15 = vsyncpa [#allocation6], 0
    %16 = vsyncpa [#allocation9], 0
    %17 = vsyncpa [#allocation4], 0
    %s18 = scalar_lea.sflag [#allocation4], 1
    %19 = vsyncpa %s18, 0
    %20 = vsyncpa [#allocation12], 0
    %s21 = scalar_lea.sflag [#allocation12], 1
    %22 = vsyncpa %s21, 0
    loop: start=0, step=1, limit=4
    $region2: #{tpu_custom_call.1} parent=1 // loop_pre_header
      _
    $region3: #{tpu_custom_call.1} parent=1 // loop_header
      %s24 = sphi 0, %s28
      %p25 = scmp.ge.s32.totalorder %s24, 4
      %s31 = sphi 0, %s43
      %s32 = sphi 0, %s39
      %s33 = sphi 0, %s31
      %s34 = sphi 0, %s32
      %s35 = sphi 0, %s33
      %s36 = sphi 0, %s34
      %s48 = sphi 0, %s50
      %s51 = sphi 0, %s48
      %s52 = sphi 0, %s51
      %s68 = sphi 0, %s52
      %s72 = sphi 0, %s72
      %s74 = sphi 0, %s72
      %s75 = sphi 0, %s74
      %s89 = sphi 0, %s75
      %s93 = sphi 0, %s93
      %s95 = sphi 0, %s93
      %s96 = sphi 0, %s95
      %s110 = sphi 0, %s96
      %s114 = sphi 0, %s114
      %s116 = sphi 0, %s114
      %s117 = sphi 0, %s116
      %s131 = sphi 0, %s117
      %s139 = sphi 0, %s141
      %s142 = sphi 0, %s139
      %s143 = sphi 0, %s142
      %s159 = sphi 0, %s143
      %s167 = sphi 0, %s169
      %s170 = sphi 0, %s167
      %s171 = sphi 0, %s170
      %s187 = sphi 0, %s171
      %s195 = sphi 0, %s197
      %s198 = sphi 0, %s195
      %s199 = sphi 0, %s198
      %s215 = sphi 0, %s199
    $region4: #{tpu_custom_call.1} parent=1 // loop_header_branch
      %27 = sbr.rel (%p25) target = $region8
    $region5: #{tpu_custom_call.1} parent=1 // loop_body
      %s29 = ssub.s32 %s24, 1
      %s30 = ssub.s32 %s24, 2
      %s37 = sadd.s32 1, %s32
      %p38 = scmp.ge.s32.totalorder %s37, 1
      %s39 = scalar_select %p38, 0, %s37
      %s40 = sadd.s32 1, %s31
      %s41 = scalar_select %p38, %s40, %s31
      %p42 = scmp.ge.s32.totalorder %s41, 2
      %s43 = scalar_select %p42, 0, %s41
      %s44 = ssub.s32 %s31, %s43
      %s45 = ssub.s32 %s32, %s39
      %s46 = sor.u32 %s44, %s45
      %p47 = scmp.eq.s32.totalorder %s46, 0
      %s49 = sadd.s32 %s48, 1
      %s50 = scalar_select %p47, %s48, %s49
      %p53 = pneg %p47
      %p54 = scmp.eq.s32.totalorder %s24, 1
      %p55 = por %p53, %p54
      %p56 = scmp.ne.s32.totalorder %s48, %s51
      %p57 = scmp.eq.s32.totalorder %s24, 0
      %p58 = por %p56, %p57
      %p59 = scmp.ne.s32.totalorder %s48, %s51
      %p60 = scmp.eq.s32.totalorder %s29, 1
      %p61 = por %p59, %p60
      %p62 = scmp.ne.s32.totalorder %s51, %s52
      %p63 = scmp.eq.s32.totalorder %s29, 0
      %p64 = por %p62, %p63
      %p65 = scmp.ne.s32.totalorder %s51, %s52
      %p66 = scmp.eq.s32.totalorder %s30, 1
      %p67 = por %p65, %p66
      %p69 = scmp.ne.s32.totalorder %s52, %s68
      %p70 = scmp.eq.s32.totalorder %s30, 0
      %p71 = por %p69, %p70
      %s73 = sadd.s32 %s72, 1
      %p76 = scmp.eq.s32.totalorder %s24, 1
      %p77 = scmp.ne.s32.totalorder %s72, %s74
      %p78 = scmp.eq.s32.totalorder %s24, 0
      %p79 = por %p77, %p78
      %p80 = scmp.ne.s32.totalorder %s72, %s74
      %p81 = scmp.eq.s32.totalorder %s29, 1
      %p82 = por %p80, %p81
      %p83 = scmp.ne.s32.totalorder %s74, %s75
      %p84 = scmp.eq.s32.totalorder %s29, 0
      %p85 = por %p83, %p84
      %p86 = scmp.ne.s32.totalorder %s74, %s75
      %p87 = scmp.eq.s32.totalorder %s30, 1
      %p88 = por %p86, %p87
      %p90 = scmp.ne.s32.totalorder %s75, %s89
      %p91 = scmp.eq.s32.totalorder %s30, 0
      %p92 = por %p90, %p91
      %s94 = sadd.s32 %s93, 1
      %p97 = scmp.eq.s32.totalorder %s24, 1
      %p98 = scmp.ne.s32.totalorder %s93, %s95
      %p99 = scmp.eq.s32.totalorder %s24, 0
      %p100 = por %p98, %p99
      %p101 = scmp.ne.s32.totalorder %s93, %s95
      %p102 = scmp.eq.s32.totalorder %s29, 1
      %p103 = por %p101, %p102
      %p104 = scmp.ne.s32.totalorder %s95, %s96
      %p105 = scmp.eq.s32.totalorder %s29, 0
      %p106 = por %p104, %p105
      %p107 = scmp.ne.s32.totalorder %s95, %s96
      %p108 = scmp.eq.s32.totalorder %s30, 1
      %p109 = por %p107, %p108
      %p111 = scmp.ne.s32.totalorder %s96, %s110
      %p112 = scmp.eq.s32.totalorder %s30, 0
      %p113 = por %p111, %p112
      %s115 = sadd.s32 %s114, 1
      %p118 = scmp.eq.s32.totalorder %s24, 1
      %p119 = scmp.ne.s32.totalorder %s114, %s116
      %p120 = scmp.eq.s32.totalorder %s24, 0
      %p121 = por %p119, %p120
      %p122 = scmp.ne.s32.totalorder %s114, %s116
      %p123 = scmp.eq.s32.totalorder %s29, 1
      %p124 = por %p122, %p123
      %p125 = scmp.ne.s32.totalorder %s116, %s117
      %p126 = scmp.eq.s32.totalorder %s29, 0
      %p127 = por %p125, %p126
      %p128 = scmp.ne.s32.totalorder %s116, %s117
      %p129 = scmp.eq.s32.totalorder %s30, 1
      %p130 = por %p128, %p129
      %p132 = scmp.ne.s32.totalorder %s117, %s131
      %p133 = scmp.eq.s32.totalorder %s30, 0
      %p134 = por %p132, %p133
      %s135 = ssub.s32 %s31, %s43
      %s136 = ssub.s32 %s32, %s39
      %s137 = sor.u32 %s135, %s136
      %p138 = scmp.eq.s32.totalorder %s137, 0
      %s140 = sadd.s32 %s139, 1
      %s141 = scalar_select %p138, %s139, %s140
      %p144 = pneg %p138
      %p145 = scmp.eq.s32.totalorder %s24, 1
      %p146 = por %p144, %p145
      %p147 = scmp.ne.s32.totalorder %s139, %s142
      %p148 = scmp.eq.s32.totalorder %s24, 0
      %p149 = por %p147, %p148
      %p150 = scmp.ne.s32.totalorder %s139, %s142
      %p151 = scmp.eq.s32.totalorder %s29, 1
      %p152 = por %p150, %p151
      %p153 = scmp.ne.s32.totalorder %s142, %s143
      %p154 = scmp.eq.s32.totalorder %s29, 0
      %p155 = por %p153, %p154
      %p156 = scmp.ne.s32.totalorder %s142, %s143
      %p157 = scmp.eq.s32.totalorder %s30, 1
      %p158 = por %p156, %p157
      %p160 = scmp.ne.s32.totalorder %s143, %s159
      %p161 = scmp.eq.s32.totalorder %s30, 0
      %p162 = por %p160, %p161
      %s163 = ssub.s32 %s31, %s43
      %s164 = ssub.s32 %s32, %s39
      %s165 = sor.u32 %s163, %s164
      %p166 = scmp.eq.s32.totalorder %s165, 0
      %s168 = sadd.s32 %s167, 1
      %s169 = scalar_select %p166, %s167, %s168
      %p172 = pneg %p166
      %p173 = scmp.eq.s32.totalorder %s24, 1
      %p174 = por %p172, %p173
      %p175 = scmp.ne.s32.totalorder %s167, %s170
      %p176 = scmp.eq.s32.totalorder %s24, 0
      %p177 = por %p175, %p176
      %p178 = scmp.ne.s32.totalorder %s167, %s170
      %p179 = scmp.eq.s32.totalorder %s29, 1
      %p180 = por %p178, %p179
      %p181 = scmp.ne.s32.totalorder %s170, %s171
      %p182 = scmp.eq.s32.totalorder %s29, 0
      %p183 = por %p181, %p182
      %p184 = scmp.ne.s32.totalorder %s170, %s171
      %p185 = scmp.eq.s32.totalorder %s30, 1
      %p186 = por %p184, %p185
      %p188 = scmp.ne.s32.totalorder %s171, %s187
      %p189 = scmp.eq.s32.totalorder %s30, 0
      %p190 = por %p188, %p189
      %s191 = ssub.s32 %s31, %s43
      %s192 = ssub.s32 %s32, %s39
      %s193 = sor.u32 %s191, %s192
      %p194 = scmp.eq.s32.totalorder %s193, 0
      %s196 = sadd.s32 %s195, 1
      %s197 = scalar_select %p194, %s195, %s196
      %p200 = pneg %p194
      %p201 = scmp.eq.s32.totalorder %s24, 1
      %p202 = por %p200, %p201
      %p203 = scmp.ne.s32.totalorder %s195, %s198
      %p204 = scmp.eq.s32.totalorder %s24, 0
      %p205 = por %p203, %p204
      %p206 = scmp.ne.s32.totalorder %s195, %s198
      %p207 = scmp.eq.s32.totalorder %s29, 1
      %p208 = por %p206, %p207
      %p209 = scmp.ne.s32.totalorder %s198, %s199
      %p210 = scmp.eq.s32.totalorder %s29, 0
      %p211 = por %p209, %p210
      %p212 = scmp.ne.s32.totalorder %s198, %s199
      %p213 = scmp.eq.s32.totalorder %s30, 1
      %p214 = por %p212, %p213
      %p216 = scmp.ne.s32.totalorder %s199, %s215
      %p217 = scmp.eq.s32.totalorder %s30, 0
      %p218 = por %p216, %p217
      %p219 = scmp.le.s32.totalorder 1, %s24
      %p220 = scmp.lt.s32.totalorder %s24, 3
      %p221 = pnand %p219, %p220
      %p222 = pneg %p221
      // Predicated region
      $region9: #{tpu_custom_call.1} parent=5 // pred_check
        _
      $region10: #{tpu_custom_call.1} parent=5 // pred_check_branch
        %224 = sbr.rel (%p221) target = $region12
      $region11: #{tpu_custom_call.1} parent=5 // pred_region
        %s225 = ssub.s32 %s24, 1
        // Predicated region
        $region13: #{tpu_custom_call.1} parent=11 // pred_check
          %p226 = pneg %p85
        $region14: #{tpu_custom_call.1} parent=11 // pred_check_branch
          %228 = sbr.rel (%p226) target = $region16
        $region15: #{tpu_custom_call.1} parent=11 // pred_region
          %s230 = ssub.s32 256, 256
          %231 = vsyncadd [#allocation6], %s230
          %s232 = sshll.u32 [#allocation5], 4
          %s233 = int_to_ptr.vmem [resolvable:$true] %s232
          %238 = dma.hbm_to_vmem [thread:$0]  %s1, 256, %s233, [#allocation6], 64, 64, 4
        $region16: #{tpu_custom_call.1} parent=11 // pred_fallthru
          _
        // Predicated region
        $region17: #{tpu_custom_call.1} parent=11 // pred_check
          %p239 = pneg %p106
        $region18: #{tpu_custom_call.1} parent=11 // pred_check_branch
          %241 = sbr.rel (%p239) target = $region20
        $region19: #{tpu_custom_call.1} parent=11 // pred_region
          %s243 = ssub.s32 256, 256
          %244 = vsyncadd [#allocation6], %s243
          %s245 = sshll.u32 [#allocation7], 4
          %s246 = int_to_ptr.vmem [resolvable:$true] %s245
          %251 = dma.hbm_to_vmem [thread:$0]  %s2, 256, %s246, [#allocation6], 64, 64, 4
        $region20: #{tpu_custom_call.1} parent=11 // pred_fallthru
          _
        // Predicated region
        $region21: #{tpu_custom_call.1} parent=11 // pred_check
          %p252 = pneg %p127
        $region22: #{tpu_custom_call.1} parent=11 // pred_check_branch
          %254 = sbr.rel (%p252) target = $region24
        $region23: #{tpu_custom_call.1} parent=11 // pred_region
          %s256 = ssub.s32 256, 256
          %257 = vsyncadd [#allocation9], %s256
          %s258 = sshll.u32 [#allocation8], 4
          %s259 = int_to_ptr.vmem [resolvable:$true] %s258
          %264 = dma.hbm_to_vmem [thread:$0]  %s3, 256, %s259, [#allocation9], 64, 64, 4
        $region24: #{tpu_custom_call.1} parent=11 // pred_fallthru
          _
      $region12: #{tpu_custom_call.1} parent=5 // pred_fallthru
        _
      %p265 = scmp.lt.s32.totalorder %s24, 2
      // Predicated region
      $region25: #{tpu_custom_call.1} parent=5 // pred_check
        %p266 = pneg %p265
      $region26: #{tpu_custom_call.1} parent=5 // pred_check_branch
        %268 = sbr.rel (%p266) target = $region28
      $region27: #{tpu_custom_call.1} parent=5 // pred_region
        // Predicated region
        $region29: #{tpu_custom_call.1} parent=27 // pred_check
          %p269 = pneg %p58
        $region30: #{tpu_custom_call.1} parent=27 // pred_check_branch
          %271 = sbr.rel (%p269) target = $region32
        $region31: #{tpu_custom_call.1} parent=27 // pred_region
          %s272 = sand.u32 %s48, 1
          %s273 = scalar_lea.sflag [#allocation3], %s272
          %s274 = sand.u32 %s48, 1
          %s275 = smul.addr %s274, 4
          %s276 = scalar_lea.vmem [#allocation2], %s275
          %s278 = ssub.s32 64, 64
          %279 = vsyncadd %s273, %s278
          %s280 = sadd.s32 %s32, %s31
          %s281 = smul.addr %s280, 64
          %s282 = scalar_lea.hbm %s0, %s281
          %s284 = sshll.u32 %s276, 4
          %s285 = int_to_ptr.vmem [resolvable:$true] %s284
          %287 = dma.hbm_to_vmem [thread:$0]  %s282, 64, %s285, %s273
        $region32: #{tpu_custom_call.1} parent=27 // pred_fallthru
          _
      $region28: #{tpu_custom_call.1} parent=5 // pred_fallthru
        _
      %p288 = scmp.le.s32.totalorder 1, %s24
      %p289 = scmp.lt.s32.totalorder %s24, 3
      %p290 = pnand %p288, %p289
      %p291 = pneg %p290
      // Predicated region
      $region33: #{tpu_custom_call.1} parent=5 // pred_check
        _
      $region34: #{tpu_custom_call.1} parent=5 // pred_check_branch
        %293 = sbr.rel (%p290) target = $region36
      $region35: #{tpu_custom_call.1} parent=5 // pred_region
        %s294 = ssub.s32 %s24, 1
        %s295 = sand.u32 %s51, 1
        %s296 = scalar_lea.sflag [#allocation3], %s295
        %s297 = sand.u32 %s51, 1
        %s298 = smul.addr %s297, 4
        %s299 = scalar_lea.vmem [#allocation2], %s298
        // Predicated region
        $region37: #{tpu_custom_call.1} parent=35 // pred_check
          %p300 = pneg %p64
        $region38: #{tpu_custom_call.1} parent=35 // pred_check_branch
          %302 = sbr.rel (%p300) target = $region40
        $region39: #{tpu_custom_call.1} parent=35 // pred_region
          %303 = dma.done %s296, 64
        $region40: #{tpu_custom_call.1} parent=35 // pred_fallthru
          _
        // Predicated region
        $region41: #{tpu_custom_call.1} parent=35 // pred_check
          %p304 = pneg %p85
        $region42: #{tpu_custom_call.1} parent=35 // pred_check_branch
          %306 = sbr.rel (%p304) target = $region44
        $region43: #{tpu_custom_call.1} parent=35 // pred_region
          %307 = dma.done [#allocation6], 256
        $region44: #{tpu_custom_call.1} parent=35 // pred_fallthru
          _
        // Predicated region
        $region45: #{tpu_custom_call.1} parent=35 // pred_check
          %p308 = pneg %p106
        $region46: #{tpu_custom_call.1} parent=35 // pred_check_branch
          %310 = sbr.rel (%p308) target = $region48
        $region47: #{tpu_custom_call.1} parent=35 // pred_region
          %311 = dma.done [#allocation6], 256
        $region48: #{tpu_custom_call.1} parent=35 // pred_fallthru
          _
        // Predicated region
        $region49: #{tpu_custom_call.1} parent=35 // pred_check
          %p312 = pneg %p127
        $region50: #{tpu_custom_call.1} parent=35 // pred_check_branch
          %314 = sbr.rel (%p312) target = $region52
        $region51: #{tpu_custom_call.1} parent=35 // pred_region
          %315 = dma.done [#allocation9], 256
        $region52: #{tpu_custom_call.1} parent=35 // pred_fallthru
          _
        %s316 = sand.u32 %s51, 1
        %s317 = scalar_lea.sflag [#allocation3], %s316
        %s318 = sand.u32 %s51, 1
        %s319 = smul.addr %s318, 4
        %s320 = scalar_lea.vmem [#allocation2], %s319
        %p321 = pneg %p64
        %p322 = pneg %p61
        %p323 = pneg %p85
        %p324 = pneg %p82
        %p325 = pneg %p106
        %p326 = pneg %p103
        %p327 = pneg %p127
        %p328 = pneg %p124
        %p329 = pneg %p155
        %p330 = pneg %p152
        %s331 = sand.u32 %s142, 1
        %s332 = scalar_lea.sflag [#allocation4], %s331
        %s333 = sand.u32 %s142, 1
        %s334 = smul.addr %s333, 16
        %s335 = scalar_lea.vmem [#allocation10], %s334
        %p336 = pneg %p183
        %p337 = pneg %p180
        %s338 = sand.u32 %s29, 1
        %s339 = scalar_lea.sflag [#allocation12], %s338
        %s340 = sand.u32 %s170, 1
        %s341 = smul.addr %s340, 16
        %s342 = scalar_lea.vmem [#allocation11], %s341
        %p343 = pneg %p211
        %p344 = pneg %p208
        %s345 = sand.u32 %s29, 1
        %s346 = scalar_lea.sflag [#allocation12], %s345
        %s347 = sand.u32 %s198, 1
        %s348 = smul.addr %s347, 16
        %s349 = scalar_lea.vmem [#allocation13], %s348
        %v351 = vld [vmem:[%s299] sm:$0xf]
        %v352 = vld [vmem:[#allocation5] sm:$0xf]
        %v353 = vld [vmem:[#allocation5 + $0x4] sm:$0xf]
        %v354 = vld [vmem:[#allocation5 + $0x8] sm:$0xf]
        %v355 = vld [vmem:[#allocation5 + $0xc] sm:$0xf]
        %v360 = vunpack.c.l.b16 %v352
        %v361 = vunpack.c.l.b16 %v353
        %v362 = vunpack.c.l.b16 %v354
        %v363 = vunpack.c.l.b16 %v355
        %v364 = vpack.c.b16 %v361, %v360
        %v365 = vpack.c.b16 %v363, %v362
        %vm368 = vcmask 261120
        %v370 = vsel %vm368, %v351, 0
        %372 = vmatprep.subr.bf16.mxu0 0
        %373 = vmatpush1.bf16.msra.mxu0 0
        %374 = vmatprep.subr.bf16.mxu0 0
        %375 = vmatpush1.bf16.msra.mxu0 0
        %376 = vmatprep.subr.bf16.mxu0 0
        %377 = vmatpush1.bf16.msra.mxu0 0
        %378 = vmatprep.subr.bf16.mxu0 0
        %379 = vmatpush1.bf16.msra.mxu0 0
        %380 = vmatprep.subr.bf16.mxu0 0
        %381 = vmatpush1.bf16.msra.mxu0 0
        %382 = vmatprep.subr.bf16.mxu0 0
        %383 = vmatpush1.bf16.msra.mxu0 0
        %384 = vmatprep.subr.bf16.mxu0 0
        %385 = vmatpush1.bf16.msra.mxu0 %v365
        %386 = vmatprep.subr.bf16.mxu0 0
        %387 = vmatpush1.bf16.msra.mxu0 %v364
        %388 = vmatprep.subr.bf16.mxu0 0
        %389 = vmatpush2.bf16.msra.mxu0 0
        %390 = vmatprep.subr.bf16.mxu0 0
        %391 = vmatpush2.bf16.msra.mxu0 0
        %392 = vmatprep.subr.bf16.mxu0 0
        %393 = vmatpush2.bf16.msra.mxu0 0
        %394 = vmatprep.subr.bf16.mxu0 0
        %395 = vmatpush2.bf16.msra.mxu0 0
        %396 = vmatprep.subr.bf16.mxu0 0
        %397 = vmatpush2.bf16.msra.mxu0 0
        %398 = vmatprep.subr.bf16.mxu0 0
        %399 = vmatpush2.bf16.msra.mxu0 0
        %400 = vmatprep.subr.bf16.mxu0 0
        %401 = vmatpush2.bf16.msra.mxu0 0
        %402 = vmatprep.subr.bf16.mxu0 0
        %403 = vmatpush2.bf16.msra.mxu0 0
        %404 = vmatprep.mubr.bf16.mxu0 0
        %405 = vmatmul.mubr.bf16.gmra.mxu0 %v370
        %v406 = vpop.f32.mrf.mxu0
        %v407 = vadd.f32 0.0, %v406
        %v408 = vpop.f32.mrf.mxu0
        %v409 = vpop.f32.mrf.mxu0
        %v410 = vpop.f32.mrf.mxu0
        %411 = vdwg.mxu0
        %v412 = vpack.c.bf16 %v407, %v407
        %vm413 = vcmask 125952
        %414 = vst.msk [vmem:[%s335] sm:$0xf] %vm413, %v412
        %v416 = vunpack.c.l.b16 %v412
        %v417 = vpack.c.b16 %v416, %v416
        %418 = vrot.lane.b32.xlu0 %v417, 112
        %v419 = vpop.permute.xlu0 %418
        %s421 = scalar_lea.vmem %s335, 4 [#allocation10]
        %422 = vst.msk [vmem:[%s421] sm:$0xf] %vm413, %v419
        %423 = vrot.lane.b32.xlu0 %v417, 96
        %v424 = vpop.permute.xlu0 %423
        %s426 = scalar_lea.vmem %s335, 8 [#allocation10]
        %427 = vst.msk [vmem:[%s426] sm:$0xf] %vm413, %v424
        %428 = vrot.lane.b32.xlu0 %v417, 80
        %v429 = vpop.permute.xlu0 %428
        %s431 = scalar_lea.vmem %s335, 12 [#allocation10]
        %432 = vst.msk [vmem:[%s431] sm:$0xf] %vm413, %v429
        %v433 = vld [vmem:[#allocation7] sm:$0xf]
        %v434 = vld [vmem:[#allocation7 + $0x4] sm:$0xf]
        %v435 = vld [vmem:[#allocation7 + $0x8] sm:$0xf]
        %v436 = vld [vmem:[#allocation7 + $0xc] sm:$0xf]
        %v441 = vunpack.c.l.b16 %v433
        %v442 = vunpack.c.l.b16 %v434
        %v443 = vunpack.c.l.b16 %v435
        %v444 = vunpack.c.l.b16 %v436
        %v445 = vpack.c.b16 %v442, %v441
        %v446 = vpack.c.b16 %v444, %v443
        %449 = vmatprep.subr.bf16.mxu0 0
        %450 = vmatpush1.bf16.msra.mxu0 0
        %451 = vmatprep.subr.bf16.mxu0 0
        %452 = vmatpush1.bf16.msra.mxu0 0
        %453 = vmatprep.subr.bf16.mxu0 0
        %454 = vmatpush1.bf16.msra.mxu0 0
        %455 = vmatprep.subr.bf16.mxu0 0
        %456 = vmatpush1.bf16.msra.mxu0 0
        %457 = vmatprep.subr.bf16.mxu0 0
        %458 = vmatpush1.bf16.msra.mxu0 0
        %459 = vmatprep.subr.bf16.mxu0 0
        %460 = vmatpush1.bf16.msra.mxu0 0
        %461 = vmatprep.subr.bf16.mxu0 0
        %462 = vmatpush1.bf16.msra.mxu0 %v446
        %463 = vmatprep.subr.bf16.mxu0 0
        %464 = vmatpush1.bf16.msra.mxu0 %v445
        %465 = vmatprep.subr.bf16.mxu0 0
        %466 = vmatpush2.bf16.msra.mxu0 0
        %467 = vmatprep.subr.bf16.mxu0 0
        %468 = vmatpush2.bf16.msra.mxu0 0
        %469 = vmatprep.subr.bf16.mxu0 0
        %470 = vmatpush2.bf16.msra.mxu0 0
        %471 = vmatprep.subr.bf16.mxu0 0
        %472 = vmatpush2.bf16.msra.mxu0 0
        %473 = vmatprep.subr.bf16.mxu0 0
        %474 = vmatpush2.bf16.msra.mxu0 0
        %475 = vmatprep.subr.bf16.mxu0 0
        %476 = vmatpush2.bf16.msra.mxu0 0
        %477 = vmatprep.subr.bf16.mxu0 0
        %478 = vmatpush2.bf16.msra.mxu0 0
        %479 = vmatprep.subr.bf16.mxu0 0
        %480 = vmatpush2.bf16.msra.mxu0 0
        %481 = vmatprep.mubr.bf16.mxu0 0
        %482 = vmatmul.mubr.bf16.gmra.mxu0 %v370
        %v483 = vpop.f32.mrf.mxu0
        %v484 = vadd.f32 0.0, %v483
        %v485 = vpop.f32.mrf.mxu0
        %v486 = vpop.f32.mrf.mxu0
        %v487 = vpop.f32.mrf.mxu0
        %488 = vdwg.mxu0
        %v489 = vpack.c.bf16 %v484, %v484
        %490 = vst.msk [vmem:[%s342] sm:$0xf] %vm413, %v489
        %v492 = vunpack.c.l.b16 %v489
        %v493 = vpack.c.b16 %v492, %v492
        %494 = vrot.lane.b32.xlu0 %v493, 112
        %v495 = vpop.permute.xlu0 %494
        %s497 = scalar_lea.vmem %s342, 4 [#allocation11]
        %498 = vst.msk [vmem:[%s497] sm:$0xf] %vm413, %v495
        %499 = vrot.lane.b32.xlu0 %v493, 96
        %v500 = vpop.permute.xlu0 %499
        %s502 = scalar_lea.vmem %s342, 8 [#allocation11]
        %503 = vst.msk [vmem:[%s502] sm:$0xf] %vm413, %v500
        %504 = vrot.lane.b32.xlu0 %v493, 80
        %v505 = vpop.permute.xlu0 %504
        %s507 = scalar_lea.vmem %s342, 12 [#allocation11]
        %508 = vst.msk [vmem:[%s507] sm:$0xf] %vm413, %v505
        %v509 = vld [vmem:[#allocation8] sm:$0xf]
        %v510 = vld [vmem:[#allocation8 + $0x4] sm:$0xf]
        %v511 = vld [vmem:[#allocation8 + $0x8] sm:$0xf]
        %v512 = vld [vmem:[#allocation8 + $0xc] sm:$0xf]
        %v517 = vunpack.c.l.b16 %v509
        %v518 = vunpack.c.l.b16 %v510
        %v519 = vunpack.c.l.b16 %v511
        %v520 = vunpack.c.l.b16 %v512
        %v521 = vpack.c.b16 %v518, %v517
        %v522 = vpack.c.b16 %v520, %v519
        %525 = vmatprep.subr.bf16.mxu0 0
        %526 = vmatpush1.bf16.msra.mxu0 0
        %527 = vmatprep.subr.bf16.mxu0 0
        %528 = vmatpush1.bf16.msra.mxu0 0
        %529 = vmatprep.subr.bf16.mxu0 0
        %530 = vmatpush1.bf16.msra.mxu0 0
        %531 = vmatprep.subr.bf16.mxu0 0
        %532 = vmatpush1.bf16.msra.mxu0 0
        %533 = vmatprep.subr.bf16.mxu0 0
        %534 = vmatpush1.bf16.msra.mxu0 0
        %535 = vmatprep.subr.bf16.mxu0 0
        %536 = vmatpush1.bf16.msra.mxu0 0
        %537 = vmatprep.subr.bf16.mxu0 0
        %538 = vmatpush1.bf16.msra.mxu0 %v522
        %539 = vmatprep.subr.bf16.mxu0 0
        %540 = vmatpush1.bf16.msra.mxu0 %v521
        %541 = vmatprep.subr.bf16.mxu0 0
        %542 = vmatpush2.bf16.msra.mxu0 0
        %543 = vmatprep.subr.bf16.mxu0 0
        %544 = vmatpush2.bf16.msra.mxu0 0
        %545 = vmatprep.subr.bf16.mxu0 0
        %546 = vmatpush2.bf16.msra.mxu0 0
        %547 = vmatprep.subr.bf16.mxu0 0
        %548 = vmatpush2.bf16.msra.mxu0 0
        %549 = vmatprep.subr.bf16.mxu0 0
        %550 = vmatpush2.bf16.msra.mxu0 0
        %551 = vmatprep.subr.bf16.mxu0 0
        %552 = vmatpush2.bf16.msra.mxu0 0
        %553 = vmatprep.subr.bf16.mxu0 0
        %554 = vmatpush2.bf16.msra.mxu0 0
        %555 = vmatprep.subr.bf16.mxu0 0
        %556 = vmatpush2.bf16.msra.mxu0 0
        %557 = vmatprep.mubr.bf16.mxu0 0
        %558 = vmatmul.mubr.bf16.gmra.mxu0 %v370
        %v559 = vpop.f32.mrf.mxu0
        %v560 = vadd.f32 0.0, %v559
        %v561 = vpop.f32.mrf.mxu0
        %v562 = vpop.f32.mrf.mxu0
        %v563 = vpop.f32.mrf.mxu0
        %564 = vdwg.mxu0
        %v565 = vpack.c.bf16 %v560, %v560
        %566 = vst.msk [vmem:[%s349] sm:$0xf] %vm413, %v565
        %v568 = vunpack.c.l.b16 %v565
        %v569 = vpack.c.b16 %v568, %v568
        %570 = vrot.lane.b32.xlu0 %v569, 112
        %v571 = vpop.permute.xlu0 %570
        %s573 = scalar_lea.vmem %s349, 4 [#allocation13]
        %574 = vst.msk [vmem:[%s573] sm:$0xf] %vm413, %v571
        %575 = vrot.lane.b32.xlu0 %v569, 96
        %v576 = vpop.permute.xlu0 %575
        %s578 = scalar_lea.vmem %s349, 8 [#allocation13]
        %579 = vst.msk [vmem:[%s578] sm:$0xf] %vm413, %v576
        %580 = vrot.lane.b32.xlu0 %v569, 80
        %v581 = vpop.permute.xlu0 %580
        %s583 = scalar_lea.vmem %s349, 12 [#allocation13]
        %584 = vst.msk [vmem:[%s583] sm:$0xf] %vm413, %v581
        %s585 = sand.u32 %s142, 1
        %s586 = scalar_lea.sflag [#allocation4], %s585
        %s587 = sand.u32 %s142, 1
        %s588 = smul.addr %s587, 16
        %s589 = scalar_lea.vmem [#allocation10], %s588
        %s590 = sand.u32 %s29, 1
        %s591 = scalar_lea.sflag [#allocation12], %s590
        %s592 = sand.u32 %s170, 1
        %s593 = smul.addr %s592, 16
        %s594 = scalar_lea.vmem [#allocation11], %s593
        %s595 = sand.u32 %s29, 1
        %s596 = scalar_lea.sflag [#allocation12], %s595
        %s597 = sand.u32 %s198, 1
        %s598 = smul.addr %s597, 16
        %s599 = scalar_lea.vmem [#allocation13], %s598
        // Predicated region
        $region53: #{tpu_custom_call.1} parent=35 // pred_check
          %p600 = pneg %p152
        $region54: #{tpu_custom_call.1} parent=35 // pred_check_branch
          %602 = sbr.rel (%p600) target = $region56
        $region55: #{tpu_custom_call.1} parent=35 // pred_region
          %s604 = ssub.s32 256, 256
          %605 = vsyncadd %s586, %s604
          %s606 = smul.addr %s33, 4
          %s607 = sadd.s32 %s34, %s606
          %s608 = smul.addr %s607, 64
          %s609 = scalar_lea.hbm %s4, %s608
          %s610 = sshll.u32 %s589, 4
          %s611 = int_to_ptr.vmem [resolvable:$true] %s610
          %616 = dma.vmem_to_hbm [thread:$0]  %s611, 256, %s609, %s586, 64, 64, 4
        $region56: #{tpu_custom_call.1} parent=35 // pred_fallthru
          _
        // Predicated region
        $region57: #{tpu_custom_call.1} parent=35 // pred_check
          %p617 = pneg %p180
        $region58: #{tpu_custom_call.1} parent=35 // pred_check_branch
          %619 = sbr.rel (%p617) target = $region60
        $region59: #{tpu_custom_call.1} parent=35 // pred_region
          %s621 = ssub.s32 256, 256
          %622 = vsyncadd %s591, %s621
          %s623 = smul.addr %s33, 4
          %s624 = sadd.s32 %s34, %s623
          %s625 = smul.addr %s624, 64
          %s626 = scalar_lea.hbm %s5, %s625
          %s627 = sshll.u32 %s594, 4
          %s628 = int_to_ptr.vmem [resolvable:$true] %s627
          %633 = dma.vmem_to_hbm [thread:$0]  %s628, 256, %s626, %s591, 64, 64, 4
        $region60: #{tpu_custom_call.1} parent=35 // pred_fallthru
          _
        // Predicated region
        $region61: #{tpu_custom_call.1} parent=35 // pred_check
          %p634 = pneg %p208
        $region62: #{tpu_custom_call.1} parent=35 // pred_check_branch
          %636 = sbr.rel (%p634) target = $region64
        $region63: #{tpu_custom_call.1} parent=35 // pred_region
          %s638 = ssub.s32 256, 256
          %639 = vsyncadd %s596, %s638
          %s640 = smul.addr %s33, 4
          %s641 = sadd.s32 %s34, %s640
          %s642 = smul.addr %s641, 64
          %s643 = scalar_lea.hbm %s6, %s642
          %s644 = sshll.u32 %s599, 4
          %s645 = int_to_ptr.vmem [resolvable:$true] %s644
          %650 = dma.vmem_to_hbm [thread:$0]  %s645, 256, %s643, %s596, 64, 64, 4
        $region64: #{tpu_custom_call.1} parent=35 // pred_fallthru
          _
      $region36: #{tpu_custom_call.1} parent=5 // pred_fallthru
        _
      %p651 = scmp.le.s32.totalorder 2, %s24
      // Predicated region
      $region65: #{tpu_custom_call.1} parent=5 // pred_check
        %p652 = pneg %p651
      $region66: #{tpu_custom_call.1} parent=5 // pred_check_branch
        %654 = sbr.rel (%p652) target = $region68
      $region67: #{tpu_custom_call.1} parent=5 // pred_region
        %s655 = ssub.s32 %s24, 2
        // Predicated region
        $region69: #{tpu_custom_call.1} parent=67 // pred_check
          %p656 = pneg %p158
        $region70: #{tpu_custom_call.1} parent=67 // pred_check_branch
          %658 = sbr.rel (%p656) target = $region72
        $region71: #{tpu_custom_call.1} parent=67 // pred_region
          %s659 = sand.u32 %s143, 1
          %s660 = scalar_lea.sflag [#allocation4], %s659
          %s661 = sand.u32 %s143, 1
          %s662 = smul.addr %s661, 16
          %s663 = scalar_lea.vmem [#allocation10], %s662
          %664 = dma.done %s660, 256
        $region72: #{tpu_custom_call.1} parent=67 // pred_fallthru
          _
        // Predicated region
        $region73: #{tpu_custom_call.1} parent=67 // pred_check
          %p665 = pneg %p186
        $region74: #{tpu_custom_call.1} parent=67 // pred_check_branch
          %667 = sbr.rel (%p665) target = $region76
        $region75: #{tpu_custom_call.1} parent=67 // pred_region
          %s668 = sand.u32 %s30, 1
          %s669 = scalar_lea.sflag [#allocation12], %s668
          %s670 = sand.u32 %s171, 1
          %s671 = smul.addr %s670, 16
          %s672 = scalar_lea.vmem [#allocation11], %s671
          %673 = dma.done %s669, 256
        $region76: #{tpu_custom_call.1} parent=67 // pred_fallthru
          _
        // Predicated region
        $region77: #{tpu_custom_call.1} parent=67 // pred_check
          %p674 = pneg %p214
        $region78: #{tpu_custom_call.1} parent=67 // pred_check_branch
          %676 = sbr.rel (%p674) target = $region80
        $region79: #{tpu_custom_call.1} parent=67 // pred_region
          %s677 = sand.u32 %s30, 1
          %s678 = scalar_lea.sflag [#allocation12], %s677
          %s679 = sand.u32 %s199, 1
          %s680 = smul.addr %s679, 16
          %s681 = scalar_lea.vmem [#allocation13], %s680
          %682 = dma.done %s678, 256
        $region80: #{tpu_custom_call.1} parent=67 // pred_fallthru
          _
      $region68: #{tpu_custom_call.1} parent=5 // pred_fallthru
        _
    $region6: #{tpu_custom_call.1} parent=1 // loop_footer
      %s28 = sadd.s32 1, %s24
    $region7: #{tpu_custom_call.1} parent=1 // loop_footer_branch
      %23 = sbr.rel target = $region3
    $region8: #{tpu_custom_call.1} parent=1 // loop_exit
      _
    %683 = vsyncpa [#allocation3], 1
    %s684 = scalar_lea.sflag [#allocation3], 1
    %685 = vsyncpa %s684, 1
    %686 = vsyncpa [#allocation6], 1
    %687 = vsyncpa [#allocation9], 1
    %688 = vsyncpa [#allocation4], 1
    %s689 = scalar_lea.sflag [#allocation4], 1
    %690 = vsyncpa %s689, 1
    %691 = vsyncpa [#allocation12], 1
    %s692 = scalar_lea.sflag [#allocation12], 1
    %693 = vsyncpa %s692, 1

</llo_original>
